<compile_context>
chip_gen: v7x
topology: tpu7x:2x2x1
jax: 0.10.0
libtpu: 0.0.40
codegen_flags: <defaults>
</compile_context>

<pallas_src>
import jax
import jax.numpy as jnp
from jax.experimental import pallas as pl
from jax.experimental.pallas import tpu as pltpu


def pos_embedding_kernel(x_ref, cls0_ref, pos_tail_ref, o_ref):
    # x_ref:        (Bt, N,   D)  patch embeddings for Bt batch elements
    # cls0_ref:     (1,  D)       class_token + pos_embed[0]  (shared, precomputed)
    # pos_tail_ref: (N,  D)       pos_embed[1:]               (shared, resident)
    # o_ref:        (Bt, N+1, D)  output block
    bt, n, d = x_ref.shape
    # Row 0: broadcast of (class_token + pos_embed[0]); tiny 1-sublane store.
    o_ref[:, 0:1, :] = jnp.broadcast_to(cls0_ref[...].reshape(1, 1, d), (bt, 1, d))
    # Rows 1..N: x + pos_embed[1:]; single pass over the streamed block, stored directly
    # at sublane offset 1 (no concatenated full-block temp).
    o_ref[:, 1:, :] = x_ref[...] + pos_tail_ref[...].reshape(1, n, d)


def _chip_config():
    """Generation-aware block-size target and VMEM limits."""
    kind = ""
    try:
        kind = jax.devices()[0].device_kind.lower()
    except Exception:  # pragma: no cover - defensive; fall through to defaults
        pass
    if ("v5 lite" in kind) or ("v5e" in kind) or ("v5lite" in kind):
        # v5e: 16 MiB default scoped VMEM, 128 MiB physical, 1 TensorCore.
        return dict(target=2 << 20, scoped_default=16 << 20, phys=128 << 20, two_tc=False)
    if "v7" in kind:
        # v7x: 32 MiB scoped default, 64 MiB physical, 3.2 TB/s HBM, 2 TensorCores.
        return dict(target=6 << 20, scoped_default=32 << 20, phys=64 << 20, two_tc=True)
    # v6e (and default for unknown chips): 32 MiB scoped default, 128 MiB physical, 1 TC.
    return dict(target=5 << 20, scoped_default=32 << 20, phys=128 << 20, two_tc=False)


def _choose_batch_tile(B, N, D, itemsize, cfg):
    """Largest divisor of B whose (Bt, N+1, D) out-block is <= the chip's target size.

    On 2-TC chips (v7x) optionally halve Bt to get an even number of grid steps, but only
    if the halved block still amortizes the ~0.35 us per-step overhead (>= 2 MiB).
    """
    per_batch = (N + 1) * D * itemsize
    bt = int(max(1, min(B, cfg["target"] // max(per_batch, 1))))
    while B % bt != 0:
        bt -= 1
    if cfg["two_tc"]:
        steps = B // bt
        if steps % 2 == 1 and bt % 2 == 0 and (bt // 2) * per_batch >= (2 << 20):
            bt //= 2
    return bt


def pos_embedding(x, class_token, pos_embed):
    """x: (B, N, D); class_token: (1, 1, D); pos_embed: (1, N+1, D) -> (B, N+1, D)."""
    B, N, D = x.shape
    assert class_token.shape == (1, 1, D)
    assert pos_embed.shape == (1, N + 1, D)

    # Match PyTorch type promotion (result dtype is the promoted dtype of all operands).
    out_dt = jnp.result_type(x.dtype, class_token.dtype, pos_embed.dtype)
    if x.dtype != out_dt:
        x = x.astype(out_dt)
    # Fold the class token into row 0 of the positional embedding once in the wrapper
    # (tiny op, XLA-fused); removes one kernel operand and makes row 0 a pure broadcast.
    cls0 = (class_token[0, 0, :].astype(out_dt)
            + pos_embed[0, 0, :].astype(out_dt)).reshape(1, D)
    pos_tail = pos_embed[0, 1:, :].astype(out_dt)  # (N, D)

    itemsize = jnp.dtype(out_dt).itemsize
    cfg = _chip_config()
    Bt = _choose_batch_tile(B, N, D, itemsize, cfg)
    grid = (B // Bt,)

    # VMEM budget: double-buffered x + out blocks, resident params, plus slack.
    blk_x = Bt * N * D * itemsize
    blk_o = Bt * (N + 1) * D * itemsize
    resident = (N + 1) * D * itemsize + D * itemsize
    need = 2 * (blk_x + blk_o) + 2 * resident + (1 << 20)
    vmem_limit = None
    if need > cfg["scoped_default"]:
        vmem_limit = int(min(need, int(cfg["phys"] * 0.9)))
    # TODO(synk): if a single-batch (1, N+1, D) block still exceeds physical VMEM
    # (extreme N*D), add a second grid axis splitting N in multiples of 8.

    bytes_accessed = (B * N * D            # read x
                      + B * (N + 1) * D    # write out
                      + (N + 1) * D) * itemsize  # read params once
    cost = pl.CostEstimate(flops=B * N * D, transcendentals=0,
                           bytes_accessed=int(bytes_accessed))

    return pl.pallas_call(
        pos_embedding_kernel,
        out_shape=jax.ShapeDtypeStruct((B, N + 1, D), out_dt),
        grid_spec=pltpu.PrefetchScalarGridSpec(
            num_scalar_prefetch=0,
            grid=grid,
            in_specs=[
                pl.BlockSpec((Bt, N, D), lambda b: (b, 0, 0)),  # x: Bt batch rows / step
                pl.BlockSpec((1, D), lambda b: (0, 0)),         # cls + pos[0] (resident)
                pl.BlockSpec((N, D), lambda b: (0, 0)),         # pos[1:]      (resident)
            ],
            out_specs=pl.BlockSpec((Bt, N + 1, D), lambda b: (b, 0, 0)),
        ),
        compiler_params=pltpu.CompilerParams(
            dimension_semantics=("parallel",),
            vmem_limit_bytes=vmem_limit,
        ),
        cost_estimate=cost,
    )(x, cls0, pos_tail)


def reference(x, class_token, pos_embed):
    B = x.shape[0]
    cls = jnp.broadcast_to(class_token, (B, 1, x.shape[2]))
    return jnp.concatenate([cls, x], axis=1) + pos_embed


if __name__ == "__main__":
    # Small shapes consistent with the module: batch=2, num_patches=8, embed_dim=128.
    B, N, D = 2, 8, 128

    key = jax.random.PRNGKey(0)
    k_x, k_pos, k_cls = jax.random.split(key, 3)

    x = jax.random.normal(k_x, (B, N, D), dtype=jnp.float32)
    # Deterministic "learnable" parameters (torch.randn equivalents).
    pos_embed = jax.random.normal(k_pos, (1, N + 1, D), dtype=jnp.float32)
    class_token = jax.random.normal(k_cls, (1, 1, D), dtype=jnp.float32)

    out = pos_embedding(x, class_token, pos_embed)
    out = jax.block_until_ready(out)

    ref = reference(x, class_token, pos_embed)
    assert out.shape == (B, N + 1, D), out.shape
    assert jnp.allclose(out, ref, atol=1e-6, rtol=1e-6), "mismatch vs reference"

    print("KERNEL_OK")
</pallas_src>

<mosaic_0001>
module attributes {stable_mosaic.version = 11 : i64} {
  func.func @pos_embedding_kernel(%arg0: i32, %arg1: memref<2x8x128xf32, #tpu.memory_space<vmem>>, %arg2: memref<1x128xf32, #tpu.memory_space<vmem>>, %arg3: memref<8x128xf32, #tpu.memory_space<vmem>>, %arg4: memref<2x9x128xf32, #tpu.memory_space<vmem>>) attributes {dimension_semantics = [#tpu.dimension_semantics<parallel>], iteration_bounds = array<i64: 1>, scalar_prefetch = 0 : i64, scratch_operands = 0 : i64, tpu.core_type = #tpu.core_type<tc>, window_params = [{transform_indices = @transform_0, window_bounds = array<i64: 2, 8, 128>}, {pipeline_mode = #tpu.pipeline_mode<synchronous>, transform_indices = @transform_1, window_bounds = array<i64: 1, 128>}, {pipeline_mode = #tpu.pipeline_mode<synchronous>, transform_indices = @transform_2, window_bounds = array<i64: 8, 128>}, {transform_indices = @transform_3, window_bounds = array<i64: 2, 9, 128>}]} {
    %c0 = arith.constant 0 : index
    %c0_0 = arith.constant 0 : index
    %0 = vector.load %arg2[%c0, %c0_0] : memref<1x128xf32, #tpu.memory_space<vmem>>, vector<1x128xf32>
    %1 = vector.shape_cast %0 : vector<1x128xf32> to vector<1x1x128xf32>
    %2 = vector.shape_cast %1 : vector<1x1x128xf32> to vector<1x1x128xf32>
    %3 = vector.broadcast %2 : vector<1x1x128xf32> to vector<2x1x128xf32>
    %c0_1 = arith.constant 0 : index
    %c0_2 = arith.constant 0 : index
    %c0_3 = arith.constant 0 : index
    %4 = vector.load %arg4[%c0_1, %c0_2, %c0_3] : memref<2x9x128xf32, #tpu.memory_space<vmem>>, vector<2x1x128xf32>
    tpu.vector_store %arg4[%c0_1, %c0_2, %c0_3], %3 {strides = array<i32>} : memref<2x9x128xf32, #tpu.memory_space<vmem>>, vector<2x1x128xf32>,
    %c0_4 = arith.constant 0 : index
    %c0_5 = arith.constant 0 : index
    %c0_6 = arith.constant 0 : index
    %5 = vector.load %arg1[%c0_4, %c0_5, %c0_6] : memref<2x8x128xf32, #tpu.memory_space<vmem>>, vector<2x8x128xf32>
    %c0_7 = arith.constant 0 : index
    %c0_8 = arith.constant 0 : index
    %6 = vector.load %arg3[%c0_7, %c0_8] : memref<8x128xf32, #tpu.memory_space<vmem>>, vector<8x128xf32>
    %7 = vector.shape_cast %6 : vector<8x128xf32> to vector<1x8x128xf32>
    %8 = vector.broadcast %7 : vector<1x8x128xf32> to vector<2x8x128xf32>
    %9 = arith.addf %5, %8 : vector<2x8x128xf32>
    %c0_9 = arith.constant 0 : index
    %c1 = arith.constant 1 : index
    %c0_10 = arith.constant 0 : index
    %10 = vector.load %arg4[%c0_9, %c1, %c0_10] : memref<2x9x128xf32, #tpu.memory_space<vmem>>, vector<2x8x128xf32>
    tpu.vector_store %arg4[%c0_9, %c1, %c0_10], %9 {strides = array<i32>} : memref<2x9x128xf32, #tpu.memory_space<vmem>>, vector<2x8x128xf32>,
    return
  }
  func.func @transform_0(%arg0: i32) -> (i32, i32, i32) {
    %c0_i32 = arith.constant 0 : i32
    %c0_i32_0 = arith.constant 0 : i32
    %c0_i32_1 = arith.constant 0 : i32
    return %arg0, %c0_i32, %c0_i32_0 : i32, i32, i32
  }
  func.func @transform_1(%arg0: i32) -> (i32, i32) {
    %c0_i32 = arith.constant 0 : i32
    %c0_i32_0 = arith.constant 0 : i32
    %c0_i32_1 = arith.constant 0 : i32
    return %c0_i32, %c0_i32_0 : i32, i32
  }
  func.func @transform_2(%arg0: i32) -> (i32, i32) {
    %c0_i32 = arith.constant 0 : i32
    %c0_i32_0 = arith.constant 0 : i32
    %c0_i32_1 = arith.constant 0 : i32
    return %c0_i32, %c0_i32_0 : i32, i32
  }
  func.func @transform_3(%arg0: i32) -> (i32, i32, i32) {
    %c0_i32 = arith.constant 0 : i32
    %c0_i32_0 = arith.constant 0 : i32
    %c0_i32_1 = arith.constant 0 : i32
    return %arg0, %c0_i32, %c0_i32_0 : i32, i32, i32
  }
}

</mosaic_0001>

<llo_original>
// kernel: tpu_custom_call.1
$region0: #{tpu_custom_call.1}
  #allocation0 [shape = 'u32[]', space=smem, size = 0x4, offset = 0x4, fixed_abs, tag = 'smem constant byte address 0x4 - core index']
  #allocation1 [shape = 'u32[144,128]{1,0:T(1,128)}', space=vmem, size = 0x12000, scoped, tag = 'internal scratch']
  %s0 = inlined_call_operand.hbm [shape: f32[2,8,128], index: 0, kind: input, shape index: {}]
  %s1 = inlined_call_operand.vmem [shape: f32[1,128], index: 1, kind: input, shape index: {}]
  %s2 = inlined_call_operand.hbm [shape: f32[8,128], index: 2, kind: input, shape index: {}]
  %s3 = inlined_call_operand.vmem [shape: f32[2,9,128], index: 3, kind: output, shape index: {}]
  %s4 = sld [smem:[#allocation0]]
  $region30: #{tpu_custom_call.1} parent=0
    _
  %s6 = ssub.s32 1, %s4
  %s7 = scalar_select 0, %s6, %s4
  $region1: #{tpu_custom_call.1} parent=0
    #allocation2 [shape = 'u8[8192]{0}', space=vmem, size = 0x2000, scoped, tag = 'input window, operand 0, single buffered']
    #allocation3 [shape = 's32[1]{0}', space=sflag, size = 0x4, scoped, tag = 'scoped memory for tpu_custom_call.1']
    #allocation4 [shape = 'u8[4096]{0}', space=vmem, size = 0x1000, scoped, tag = 'input window, operand 2, single buffered']
    #allocation5 [shape = 's32[1]{0}', space=sflag, size = 0x4, scoped, tag = 'scoped memory for tpu_custom_call.1']
    %8 = vsyncpa [#allocation3], 0
    %9 = vsyncpa [#allocation5], 0
    // Predicated region
    $region2: #{tpu_custom_call.1} parent=1 // pred_check
      _
    $region3: #{tpu_custom_call.1} parent=1 // pred_check_branch
      %11 = sbr.rel (0) target = $region5
    $region4: #{tpu_custom_call.1} parent=1 // pred_region
      %s13 = ssub.s32 256, 256
      %14 = vsyncadd [#allocation3], %s13
      %s15 = sshll.u32 [#allocation2], 4
      %s16 = int_to_ptr.vmem [resolvable:$true] %s15
      %21 = dma.hbm_to_vmem [thread:$0]  %s0, 256, %s16, [#allocation3], 128, 128, 8
    $region5: #{tpu_custom_call.1} parent=1 // pred_fallthru
      _
    // Predicated region
    $region6: #{tpu_custom_call.1} parent=1 // pred_check
      _
    $region7: #{tpu_custom_call.1} parent=1 // pred_check_branch
      %23 = sbr.rel (0) target = $region9
    $region8: #{tpu_custom_call.1} parent=1 // pred_region
      _
    $region9: #{tpu_custom_call.1} parent=1 // pred_fallthru
      _
    // Predicated region
    $region10: #{tpu_custom_call.1} parent=1 // pred_check
      _
    $region11: #{tpu_custom_call.1} parent=1 // pred_check_branch
      %25 = sbr.rel (0) target = $region13
    $region12: #{tpu_custom_call.1} parent=1 // pred_region
      %s27 = ssub.s32 128, 128
      %28 = vsyncadd [#allocation5], %s27
      %s30 = sshll.u32 [#allocation4], 4
      %s31 = int_to_ptr.vmem [resolvable:$true] %s30
      %33 = dma.hbm_to_vmem [thread:$0]  %s2, 128, %s31, [#allocation5]
    $region13: #{tpu_custom_call.1} parent=1 // pred_fallthru
      _
    // Predicated region
    $region14: #{tpu_custom_call.1} parent=1 // pred_check
      _
    $region15: #{tpu_custom_call.1} parent=1 // pred_check_branch
      %35 = sbr.rel (0) target = $region17
    $region16: #{tpu_custom_call.1} parent=1 // pred_region
      %36 = dma.done [#allocation3], 256
    $region17: #{tpu_custom_call.1} parent=1 // pred_fallthru
      _
    // Predicated region
    $region18: #{tpu_custom_call.1} parent=1 // pred_check
      _
    $region19: #{tpu_custom_call.1} parent=1 // pred_check_branch
      %38 = sbr.rel (0) target = $region21
    $region20: #{tpu_custom_call.1} parent=1 // pred_region
      %39 = dma.done [#allocation5], 128
    $region21: #{tpu_custom_call.1} parent=1 // pred_fallthru
      _
    %v40 = vld [vmem:[%s1] sm:$0x1]
    %41 = vst [vmem:[%s3] sm:$0x1] %v40
    %42 = vst [vmem:[%s3 + $0x10] sm:$0x1] %v40
    %v43 = vld [vmem:[#allocation2] sm:$0xff]
    %v44 = vld [vmem:[#allocation2 + $0x8] sm:$0xff]
    %v45 = vld [vmem:[#allocation4] sm:$0xff]
    %v46 = vadd.f32 %v43, %v45
    %v47 = vadd.f32 %v44, %v45
    %48 = vst [vmem:[%s3 + $0x1] sm:$0xff] %v46
    %49 = vst [vmem:[%s3 + $0x11] sm:$0xff] %v47
    // Predicated region
    $region22: #{tpu_custom_call.1} parent=1 // pred_check
      _
    $region23: #{tpu_custom_call.1} parent=1 // pred_check_branch
      %51 = sbr.rel (0) target = $region25
    $region24: #{tpu_custom_call.1} parent=1 // pred_region
      _
    $region25: #{tpu_custom_call.1} parent=1 // pred_fallthru
      _
    // Predicated region
    $region26: #{tpu_custom_call.1} parent=1 // pred_check
      _
    $region27: #{tpu_custom_call.1} parent=1 // pred_check_branch
      %53 = sbr.rel (0) target = $region29
    $region28: #{tpu_custom_call.1} parent=1 // pred_region
      _
    $region29: #{tpu_custom_call.1} parent=1 // pred_fallthru
      _
    %54 = vsyncpa [#allocation3], 1
    %55 = vsyncpa [#allocation5], 1

</llo_original>
